<compile_context>
chip_gen: v7x
topology: tpu7x:2x2x1
jax: 0.10.0
libtpu: 0.0.40
codegen_flags: <defaults>
</compile_context>

<pallas_src>
import functools

import jax
import jax.numpy as jnp
from jax import lax
from jax.experimental import pallas as pl
from jax.experimental.pallas import tpu as pltpu

_EPS = 1e-8          # matches torch.nn.functional.cosine_similarity eps
_NEG_BIG = -1e30     # finite "-inf" used to mask padded positive columns


def _round_up(x: int, m: int) -> int:
    return ((x + m - 1) // m) * m


def _vmem_capacity_bytes() -> int:
    """Physical VMEM capacity; conservative fallback if the query fails."""
    try:
        info = pltpu.get_tpu_info()
        cap = getattr(info, "vmem_capacity_bytes", None)
        if cap:
            return int(cap)
    except Exception:
        pass
    return 64 * 1024 * 1024   # v7x-sized conservative default


def _pick_block(b: int) -> int:
    """Row/column tile heuristic.

    - tiny batches: one padded tile
    - mid batches: ~b/2 so there are >= 2 row tiles (v7x megacore sharding)
    - large batches: 256 / 512 (multiples of 256 for the v6e/v7x MXU)
    """
    if b <= 128:
        return _round_up(b, 8)
    if b <= 512:
        return _round_up((b + 1) // 2, 8)
    if b < 2048:
        return 256
    return 512


def _mnrl_kernel(a_ref, p_ref, o_ref,
                 m_ref, l_ref, diag_ref,
                 *, true_b: int, block: int, has_pad: bool, resident: bool):
    i = pl.program_id(0)            # anchor-row tile        ("parallel")
    j = pl.program_id(1)            # positive-column tile   (reduction, "arbitrary")
    nj = pl.num_programs(1)

    # ---- per-row-tile init on the first column step -----------------------
    @pl.when(j == 0)
    def _init():
        m_ref[...] = jnp.full_like(m_ref, _NEG_BIG)
        l_ref[...] = jnp.zeros_like(l_ref)
        diag_ref[...] = jnp.zeros_like(diag_ref)

    # ---- fetch this positives tile (bf16, pre-normalized on the host) -----
    if resident:
        start = pl.multiple_of(j * block, block)
        p_tile = p_ref[pl.ds(start, block), :]          # slice of VMEM-resident copy
    else:
        p_tile = p_ref[...]                             # streamed bf16 tile

    # ---- scaled cosine similarities (MXU, bf16 x bf16 -> f32 accumulate) --
    # Contracting dim 1 of both operands: no explicit transpose is built.
    sim = lax.dot_general(a_ref[...], p_tile,
                          (((1,), (1,)), ((), ())),
                          preferred_element_type=jnp.float32)   # [block, block]

    # ---- diagonal (label) term, once per row tile, straight from sim ------
    @pl.when(j == i)
    def _diag():
        r = lax.broadcasted_iota(jnp.int32, sim.shape, 0)
        c = lax.broadcasted_iota(jnp.int32, sim.shape, 1)
        diag_ref[...] = jnp.sum(jnp.where(r == c, sim, 0.0),
                                axis=-1, keepdims=True)

    # ---- online logsumexp update ------------------------------------------
    def _update(s):
        m_prev = m_ref[...]
        m_new = jnp.maximum(m_prev, jnp.max(s, axis=-1, keepdims=True))
        alpha = jnp.exp(m_prev - m_new)
        l_ref[...] = alpha * l_ref[...] + jnp.sum(jnp.exp(s - m_new),
                                                  axis=-1, keepdims=True)
        m_ref[...] = m_new

    if has_pad:
        # Padded positive columns only live in the LAST column tile; gate the
        # iota/compare/select there so the common path stays VALU-light.
        @pl.when(j < nj - 1)
        def _update_plain():
            _update(sim)

        @pl.when(j == nj - 1)
        def _update_masked():
            col = j * block + lax.broadcasted_iota(jnp.int32, sim.shape, 1)
            _update(jnp.where(col < true_b, sim, _NEG_BIG))
    else:
        _update(sim)

    # ---- finalize per-row losses for this row tile -------------------------
    @pl.when(j == nj - 1)
    def _finalize():
        loss = m_ref[...] + jnp.log(l_ref[...]) - diag_ref[...]   # [block, 1]
        # Lane-dense (128-wide) unmasked store; host reads column 0.
        o_ref[...] = jnp.broadcast_to(loss, (block, 128))


def multiple_negatives_ranking_loss(anchors: jax.Array,
                                    positives: jax.Array,
                                    scale: float = 20.0,
                                    block_size: int | None = None,
                                    resident: bool | None = None) -> jax.Array:
    """Scalar MNRL loss matching the PyTorch module's forward()."""
    assert anchors.shape == positives.shape and anchors.ndim == 2
    b, d = anchors.shape

    block = block_size if block_size is not None else _pick_block(b)
    block = min(_round_up(block, 8), _round_up(b, 8))

    b_pad = _round_up(b, block)
    d_pad = _round_up(d, 128)          # lane-dense embedding dim
    has_pad = b_pad != b
    n_tiles = b_pad // block

    # ---- host-side pre-pass: cosine-normalize once, fold scale, cast bf16 --
    a32 = anchors.astype(jnp.float32)
    p32 = positives.astype(jnp.float32)
    inv_a = lax.rsqrt(jnp.maximum(jnp.sum(a32 * a32, axis=-1, keepdims=True),
                                  _EPS * _EPS))
    inv_p = lax.rsqrt(jnp.maximum(jnp.sum(p32 * p32, axis=-1, keepdims=True),
                                  _EPS * _EPS))
    a_bf = (a32 * (inv_a * float(scale))).astype(jnp.bfloat16)
    p_bf = (p32 * inv_p).astype(jnp.bfloat16)
    if b_pad != b or d_pad != d:
        pad = ((0, b_pad - b), (0, d_pad - d))
        a_bf = jnp.pad(a_bf, pad)      # padded rows / cols are exact zeros
        p_bf = jnp.pad(p_bf, pad)

    # ---- VMEM budgeting: residency decision + vmem_limit -------------------
    vmem_cap = _vmem_capacity_bytes()
    bytes_anchor = 2 * block * d_pad * 2               # double-buffered bf16
    bytes_pos_resident = 2 * b_pad * d_pad * 2         # conservative (2 bufs)
    bytes_pos_stream = 2 * block * d_pad * 2
    bytes_out = 2 * block * 128 * 4
    bytes_misc = block * block * 4 + 3 * block * 4 + (2 << 20)   # sim + scratch + slack

    if resident is None:
        resident = (bytes_anchor + bytes_pos_resident + bytes_out + bytes_misc
                    <= int(0.7 * vmem_cap))
    resident = bool(resident)

    bytes_pos = bytes_pos_resident if resident else bytes_pos_stream
    vmem_needed = bytes_anchor + bytes_pos + bytes_out + bytes_misc
    vmem_limit = int(min(0.9 * vmem_cap,
                         max(vmem_needed + (4 << 20), 32 << 20)))

    # ---- specs --------------------------------------------------------------
    if resident:
        # Whole array, constant block index => DMA'd into VMEM once.
        pos_spec = pl.BlockSpec((b_pad, d_pad), lambda i, j: (0, 0))
    else:
        pos_spec = pl.BlockSpec((block, d_pad), lambda i, j: (j, 0))

    kernel = functools.partial(_mnrl_kernel, true_b=b, block=block,
                               has_pad=has_pad, resident=resident)

    n_pos_reads = 1 if resident else n_tiles
    cost = pl.CostEstimate(
        flops=2 * b_pad * b_pad * d_pad,
        transcendentals=b_pad * b_pad,
        bytes_accessed=(b_pad * d_pad * 2                      # anchors (bf16, once)
                        + n_pos_reads * b_pad * d_pad * 2      # positives (bf16)
                        + b_pad * 128 * 4),                    # lane-dense output
    )

    out = pl.pallas_call(
        kernel,
        out_shape=jax.ShapeDtypeStruct((b_pad, 128), jnp.float32),
        grid_spec=pltpu.PrefetchScalarGridSpec(
            num_scalar_prefetch=0,
            grid=(n_tiles, n_tiles),
            in_specs=[
                pl.BlockSpec((block, d_pad), lambda i, j: (i, 0)),   # anchors (bf16)
                pos_spec,                                            # positives (bf16)
            ],
            out_specs=pl.BlockSpec((block, 128), lambda i, j: (i, 0)),
            scratch_shapes=[
                pltpu.VMEM((block, 1), jnp.float32),   # running max
                pltpu.VMEM((block, 1), jnp.float32),   # running sum
                pltpu.VMEM((block, 1), jnp.float32),   # diagonal (label) term
            ],
        ),
        compiler_params=pltpu.CompilerParams(
            dimension_semantics=("parallel", "arbitrary"),
            vmem_limit_bytes=vmem_limit,
        ),
        cost_estimate=cost,
    )(a_bf, p_bf)

    # Padded anchor rows are sliced away; divide by the true batch size (mean).
    return jnp.sum(out[:b, 0]) / b


# ----------------------------- references -----------------------------------

def _reference_loss_f32(anchors, positives, scale=20.0):
    """Pure-f32 reference matching the PyTorch module's forward()."""
    a = anchors.astype(jnp.float32)
    p = positives.astype(jnp.float32)
    a_n = a / jnp.maximum(jnp.linalg.norm(a, axis=-1, keepdims=True), _EPS)
    p_n = p / jnp.maximum(jnp.linalg.norm(p, axis=-1, keepdims=True), _EPS)
    sim = (a_n @ p_n.T) * scale
    logprobs = jax.nn.log_softmax(sim, axis=-1)
    idx = jnp.arange(sim.shape[0])
    return -jnp.mean(logprobs[idx, idx])


def _reference_loss_bf16_operands(anchors, positives, scale=20.0):
    """Reference mirroring the kernel's numerics (bf16 MXU operands, f32 rest).

    The diagonal term is taken from the same bf16 similarity matrix used for
    the log-softmax denominator, exactly as the kernel does.
    """
    a = anchors.astype(jnp.float32)
    p = positives.astype(jnp.float32)
    a_n = a * lax.rsqrt(jnp.maximum(jnp.sum(a * a, axis=-1, keepdims=True),
                                    _EPS * _EPS))
    p_n = p * lax.rsqrt(jnp.maximum(jnp.sum(p * p, axis=-1, keepdims=True),
                                    _EPS * _EPS))
    sim = jnp.dot((a_n * scale).astype(jnp.bfloat16),
                  p_n.astype(jnp.bfloat16).T,
                  preferred_element_type=jnp.float32)
    logprobs = jax.nn.log_softmax(sim, axis=-1)
    idx = jnp.arange(sim.shape[0])
    return -jnp.mean(logprobs[idx, idx])


if __name__ == "__main__":
    key = jax.random.PRNGKey(0)
    k_a, k_p = jax.random.split(key)

    # Small shapes consistent with the module: B anchors/positives of dim D.
    # B=12 with block_size=8 exercises tiling (2x2 grid), row/column padding,
    # online logsumexp across column tiles, and the j==i diagonal path.
    B, D = 12, 32
    anchors = jax.random.normal(k_a, (B, D), dtype=jnp.float32)
    positives = jax.random.normal(k_p, (B, D), dtype=jnp.float32)

    ref_bf16 = _reference_loss_bf16_operands(anchors, positives, 20.0)
    ref_f32 = _reference_loss_f32(anchors, positives, 20.0)

    # (1) VMEM-resident positives path (auto-selected for these tiny shapes).
    loss_res = jax.block_until_ready(
        multiple_negatives_ranking_loss(anchors, positives, scale=20.0,
                                        block_size=8))
    # (2) streaming-positives path, forced.
    loss_str = jax.block_until_ready(
        multiple_negatives_ranking_loss(anchors, positives, scale=20.0,
                                        block_size=8, resident=False))

    for loss in (loss_res, loss_str):
        assert bool(jnp.isfinite(loss)), loss
        # Tight check vs. a reference with identical numerics (bf16 operands).
        assert jnp.allclose(loss, ref_bf16, atol=1e-3, rtol=0.0), (loss, ref_bf16)
        # Looser check vs. pure-f32 PyTorch-semantics reference.
        assert jnp.allclose(loss, ref_f32, atol=3e-2, rtol=1e-2), (loss, ref_f32)

    # (3) 3x3 grid where padding only touches the last column tile.
    B2, D2 = 40, 48
    a2 = jax.random.normal(jax.random.PRNGKey(1), (B2, D2), dtype=jnp.float32)
    p2 = jax.random.normal(jax.random.PRNGKey(2), (B2, D2), dtype=jnp.float32)
    loss2 = jax.block_until_ready(
        multiple_negatives_ranking_loss(a2, p2, scale=20.0, block_size=16))
    ref2 = _reference_loss_bf16_operands(a2, p2, 20.0)
    assert bool(jnp.isfinite(loss2)), loss2
    assert jnp.allclose(loss2, ref2, atol=1e-3, rtol=0.0), (loss2, ref2)

    print("KERNEL_OK")
</pallas_src>

<mosaic_0001>
module attributes {stable_mosaic.version = 11 : i64} {
  func.func @_mnrl_kernel(%arg0: i32, %arg1: i32, %arg2: memref<8x128xbf16, #tpu.memory_space<vmem>>, %arg3: memref<16x128xbf16, #tpu.memory_space<vmem>>, %arg4: memref<8x128xf32, #tpu.memory_space<vmem>>, %arg5: memref<8x1xf32, #tpu.memory_space<vmem>>, %arg6: memref<8x1xf32, #tpu.memory_space<vmem>>, %arg7: memref<8x1xf32, #tpu.memory_space<vmem>>) attributes {dimension_semantics = [#tpu.dimension_semantics<parallel>, #tpu.dimension_semantics<arbitrary>], iteration_bounds = array<i64: 2, 2>, scalar_prefetch = 0 : i64, scratch_operands = 3 : i64, tpu.core_type = #tpu.core_type<tc>, window_params = [{transform_indices = @transform_0, window_bounds = array<i64: 8, 128>}, {pipeline_mode = #tpu.pipeline_mode<synchronous>, transform_indices = @transform_1, window_bounds = array<i64: 16, 128>}, {transform_indices = @transform_2, window_bounds = array<i64: 8, 128>}]} {
    %c0_i32 = arith.constant 0 : i32
    %0 = arith.cmpi eq, %arg1, %c0_i32 : i32
    %1 = arith.extui %0 : i1 to i32
    %c0_i32_0 = arith.constant 0 : i32
    %2 = arith.cmpi ne, %1, %c0_i32_0 : i32
    scf.if %2 {
      %cst_9 = arith.constant -1.000000e+30 : f32
      %21 = vector.broadcast %cst_9 : f32 to vector<8x1xf32>
      %c0_10 = arith.constant 0 : index
      %c0_11 = arith.constant 0 : index
      %22 = vector.load %arg5[%c0_10, %c0_11] : memref<8x1xf32, #tpu.memory_space<vmem>>, vector<8x1xf32>
      tpu.vector_store %arg5[%c0_10, %c0_11], %21 {strides = array<i32>} : memref<8x1xf32, #tpu.memory_space<vmem>>, vector<8x1xf32>,
      %cst_12 = arith.constant 0.000000e+00 : f32
      %23 = vector.broadcast %cst_12 : f32 to vector<8x1xf32>
      %c0_13 = arith.constant 0 : index
      %c0_14 = arith.constant 0 : index
      %24 = vector.load %arg6[%c0_13, %c0_14] : memref<8x1xf32, #tpu.memory_space<vmem>>, vector<8x1xf32>
      tpu.vector_store %arg6[%c0_13, %c0_14], %23 {strides = array<i32>} : memref<8x1xf32, #tpu.memory_space<vmem>>, vector<8x1xf32>,
      %cst_15 = arith.constant 0.000000e+00 : f32
      %25 = vector.broadcast %cst_15 : f32 to vector<8x1xf32>
      %c0_16 = arith.constant 0 : index
      %c0_17 = arith.constant 0 : index
      %26 = vector.load %arg7[%c0_16, %c0_17] : memref<8x1xf32, #tpu.memory_space<vmem>>, vector<8x1xf32>
      tpu.vector_store %arg7[%c0_16, %c0_17], %25 {strides = array<i32>} : memref<8x1xf32, #tpu.memory_space<vmem>>, vector<8x1xf32>,
    } else {
    }
    %c8_i32 = arith.constant 8 : i32
    %3 = arith.muli %arg1, %c8_i32 : i32
    %4 = tpu.assume_multiple %3, 8 : i32
    %5 = arith.index_cast %4 : i32 to index
    %c0 = arith.constant 0 : index
    %6 = vector.load %arg3[%5, %c0] : memref<16x128xbf16, #tpu.memory_space<vmem>>, vector<8x128xbf16>
    %c0_1 = arith.constant 0 : index
    %c0_2 = arith.constant 0 : index
    %7 = vector.load %arg2[%c0_1, %c0_2] : memref<8x128xbf16, #tpu.memory_space<vmem>>, vector<8x128xbf16>
    %cst = arith.constant dense<0.000000e+00> : vector<8x8xf32>
    %8 = tpu.matmul %7, %6, %cst {dimension_numbers = #tpu.dot_dimension_numbers<[1], [1], [0], [0], [0, 0, 1, 0], [], []>} : vector<8x128xbf16>, vector<8x128xbf16>, vector<8x8xf32> -> vector<8x8xf32>
    %9 = arith.cmpi eq, %arg1, %arg0 : i32
    %10 = arith.extui %9 : i1 to i32
    %c0_i32_3 = arith.constant 0 : i32
    %11 = arith.cmpi ne, %10, %c0_i32_3 : i32
    scf.if %11 {
      %21 = tpu.iota {dimensions = array<i32: 0>} : vector<8x8xi32>
      %22 = tpu.iota {dimensions = array<i32: 1>} : vector<8x8xi32>
      %23 = arith.cmpi eq, %21, %22 : vector<8x8xi32>
      %cst_9 = arith.constant 0.000000e+00 : f32
      %24 = vector.broadcast %cst_9 : f32 to vector<8x8xf32>
      %25 = arith.select %23, %8, %24 : vector<8x8xi1>, vector<8x8xf32>
      %cst_10 = arith.constant dense<0.000000e+00> : vector<8xf32>
      %26 = vector.multi_reduction <add>, %25, %cst_10 [1] : vector<8x8xf32> to vector<8xf32>
      %27 = vector.shape_cast %26 : vector<8xf32> to vector<8x1xf32>
      %c0_11 = arith.constant 0 : index
      %c0_12 = arith.constant 0 : index
      %28 = vector.load %arg7[%c0_11, %c0_12] : memref<8x1xf32, #tpu.memory_space<vmem>>, vector<8x1xf32>
      tpu.vector_store %arg7[%c0_11, %c0_12], %27 {strides = array<i32>} : memref<8x1xf32, #tpu.memory_space<vmem>>, vector<8x1xf32>,
    } else {
    }
    %c1_i32 = arith.constant 1 : i32
    %12 = arith.cmpi slt, %arg1, %c1_i32 : i32
    %13 = arith.extui %12 : i1 to i32
    %c0_i32_4 = arith.constant 0 : i32
    %14 = arith.cmpi ne, %13, %c0_i32_4 : i32
    scf.if %14 {
      %c0_9 = arith.constant 0 : index
      %c0_10 = arith.constant 0 : index
      %21 = vector.load %arg5[%c0_9, %c0_10] : memref<8x1xf32, #tpu.memory_space<vmem>>, vector<8x1xf32>
      %cst_11 = arith.constant dense<0xFF800000> : vector<8xf32>
      %22 = vector.multi_reduction <maximumf>, %8, %cst_11 [1] : vector<8x8xf32> to vector<8xf32>
      %23 = vector.shape_cast %22 : vector<8xf32> to vector<8x1xf32>
      %24 = arith.maximumf %21, %23 : vector<8x1xf32>
      %25 = arith.subf %21, %24 : vector<8x1xf32>
      %26 = math.exp %25 : vector<8x1xf32>
      %c0_12 = arith.constant 0 : index
      %c0_13 = arith.constant 0 : index
      %27 = vector.load %arg6[%c0_12, %c0_13] : memref<8x1xf32, #tpu.memory_space<vmem>>, vector<8x1xf32>
      %28 = arith.mulf %26, %27 : vector<8x1xf32>
      %29 = vector.broadcast %24 : vector<8x1xf32> to vector<8x8xf32>
      %30 = arith.subf %8, %29 : vector<8x8xf32>
      %31 = math.exp %30 : vector<8x8xf32>
      %cst_14 = arith.constant dense<0.000000e+00> : vector<8xf32>
      %32 = vector.multi_reduction <add>, %31, %cst_14 [1] : vector<8x8xf32> to vector<8xf32>
      %33 = vector.shape_cast %32 : vector<8xf32> to vector<8x1xf32>
      %34 = arith.addf %28, %33 : vector<8x1xf32>
      %c0_15 = arith.constant 0 : index
      %c0_16 = arith.constant 0 : index
      %35 = vector.load %arg6[%c0_15, %c0_16] : memref<8x1xf32, #tpu.memory_space<vmem>>, vector<8x1xf32>
      tpu.vector_store %arg6[%c0_15, %c0_16], %34 {strides = array<i32>} : memref<8x1xf32, #tpu.memory_space<vmem>>, vector<8x1xf32>,
      %c0_17 = arith.constant 0 : index
      %c0_18 = arith.constant 0 : index
      %36 = vector.load %arg5[%c0_17, %c0_18] : memref<8x1xf32, #tpu.memory_space<vmem>>, vector<8x1xf32>
      tpu.vector_store %arg5[%c0_17, %c0_18], %24 {strides = array<i32>} : memref<8x1xf32, #tpu.memory_space<vmem>>, vector<8x1xf32>,
    } else {
    }
    %c1_i32_5 = arith.constant 1 : i32
    %15 = arith.cmpi eq, %arg1, %c1_i32_5 : i32
    %16 = arith.extui %15 : i1 to i32
    %c0_i32_6 = arith.constant 0 : i32
    %17 = arith.cmpi ne, %16, %c0_i32_6 : i32
    scf.if %17 {
      %c8_i32_9 = arith.constant 8 : i32
      %21 = arith.muli %arg1, %c8_i32_9 : i32
      %22 = tpu.iota {dimensions = array<i32: 1>} : vector<8x8xi32>
      %23 = vector.broadcast %21 : i32 to vector<8x8xi32>
      %24 = arith.addi %23, %22 : vector<8x8xi32>
      %c12_i32 = arith.constant 12 : i32
      %25 = vector.broadcast %c12_i32 : i32 to vector<8x8xi32>
      %26 = arith.cmpi slt, %24, %25 : vector<8x8xi32>
      %cst_10 = arith.constant -1.000000e+30 : f32
      %27 = vector.broadcast %cst_10 : f32 to vector<8x8xf32>
      %28 = arith.select %26, %8, %27 : vector<8x8xi1>, vector<8x8xf32>
      %c0_11 = arith.constant 0 : index
      %c0_12 = arith.constant 0 : index
      %29 = vector.load %arg5[%c0_11, %c0_12] : memref<8x1xf32, #tpu.memory_space<vmem>>, vector<8x1xf32>
      %cst_13 = arith.constant dense<0xFF800000> : vector<8xf32>
      %30 = vector.multi_reduction <maximumf>, %28, %cst_13 [1] : vector<8x8xf32> to vector<8xf32>
      %31 = vector.shape_cast %30 : vector<8xf32> to vector<8x1xf32>
      %32 = arith.maximumf %29, %31 : vector<8x1xf32>
      %33 = arith.subf %29, %32 : vector<8x1xf32>
      %34 = math.exp %33 : vector<8x1xf32>
      %c0_14 = arith.constant 0 : index
      %c0_15 = arith.constant 0 : index
      %35 = vector.load %arg6[%c0_14, %c0_15] : memref<8x1xf32, #tpu.memory_space<vmem>>, vector<8x1xf32>
      %36 = arith.mulf %34, %35 : vector<8x1xf32>
      %37 = vector.broadcast %32 : vector<8x1xf32> to vector<8x8xf32>
      %38 = arith.subf %28, %37 : vector<8x8xf32>
      %39 = math.exp %38 : vector<8x8xf32>
      %cst_16 = arith.constant dense<0.000000e+00> : vector<8xf32>
      %40 = vector.multi_reduction <add>, %39, %cst_16 [1] : vector<8x8xf32> to vector<8xf32>
      %41 = vector.shape_cast %40 : vector<8xf32> to vector<8x1xf32>
      %42 = arith.addf %36, %41 : vector<8x1xf32>
      %c0_17 = arith.constant 0 : index
      %c0_18 = arith.constant 0 : index
      %43 = vector.load %arg6[%c0_17, %c0_18] : memref<8x1xf32, #tpu.memory_space<vmem>>, vector<8x1xf32>
      tpu.vector_store %arg6[%c0_17, %c0_18], %42 {strides = array<i32>} : memref<8x1xf32, #tpu.memory_space<vmem>>, vector<8x1xf32>,
      %c0_19 = arith.constant 0 : index
      %c0_20 = arith.constant 0 : index
      %44 = vector.load %arg5[%c0_19, %c0_20] : memref<8x1xf32, #tpu.memory_space<vmem>>, vector<8x1xf32>
      tpu.vector_store %arg5[%c0_19, %c0_20], %32 {strides = array<i32>} : memref<8x1xf32, #tpu.memory_space<vmem>>, vector<8x1xf32>,
    } else {
    }
    %c1_i32_7 = arith.constant 1 : i32
    %18 = arith.cmpi eq, %arg1, %c1_i32_7 : i32
    %19 = arith.extui %18 : i1 to i32
    %c0_i32_8 = arith.constant 0 : i32
    %20 = arith.cmpi ne, %19, %c0_i32_8 : i32
    scf.if %20 {
      %c0_9 = arith.constant 0 : index
      %c0_10 = arith.constant 0 : index
      %21 = vector.load %arg5[%c0_9, %c0_10] : memref<8x1xf32, #tpu.memory_space<vmem>>, vector<8x1xf32>
      %c0_11 = arith.constant 0 : index
      %c0_12 = arith.constant 0 : index
      %22 = vector.load %arg6[%c0_11, %c0_12] : memref<8x1xf32, #tpu.memory_space<vmem>>, vector<8x1xf32>
      %23 = math.log %22 : vector<8x1xf32>
      %24 = arith.addf %21, %23 : vector<8x1xf32>
      %c0_13 = arith.constant 0 : index
      %c0_14 = arith.constant 0 : index
      %25 = vector.load %arg7[%c0_13, %c0_14] : memref<8x1xf32, #tpu.memory_space<vmem>>, vector<8x1xf32>
      %26 = arith.subf %24, %25 : vector<8x1xf32>
      %27 = vector.shape_cast %26 : vector<8x1xf32> to vector<8x1xf32>
      %28 = vector.broadcast %27 : vector<8x1xf32> to vector<8x128xf32>
      %c0_15 = arith.constant 0 : index
      %c0_16 = arith.constant 0 : index
      %29 = vector.load %arg4[%c0_15, %c0_16] : memref<8x128xf32, #tpu.memory_space<vmem>>, vector<8x128xf32>
      tpu.vector_store %arg4[%c0_15, %c0_16], %28 {strides = array<i32>} : memref<8x128xf32, #tpu.memory_space<vmem>>, vector<8x128xf32>,
    } else {
    }
    return
  }
  func.func @transform_0(%arg0: i32, %arg1: i32) -> (i32, i32) {
    %c0_i32 = arith.constant 0 : i32
    %c0_i32_0 = arith.constant 0 : i32
    return %arg0, %c0_i32 : i32, i32
  }
  func.func @transform_1(%arg0: i32, %arg1: i32) -> (i32, i32) {
    %c0_i32 = arith.constant 0 : i32
    %c0_i32_0 = arith.constant 0 : i32
    %c0_i32_1 = arith.constant 0 : i32
    return %c0_i32, %c0_i32_0 : i32, i32
  }
  func.func @transform_2(%arg0: i32, %arg1: i32) -> (i32, i32) {
    %c0_i32 = arith.constant 0 : i32
    %c0_i32_0 = arith.constant 0 : i32
    return %arg0, %c0_i32 : i32, i32
  }
}

</mosaic_0001>

<llo_original>
// kernel: tpu_custom_call.1
$region0: #{tpu_custom_call.1}
  #allocation0 [shape = 'u32[]', space=smem, size = 0x4, offset = 0x4, fixed_abs, tag = 'smem constant byte address 0x4 - core index']
  #allocation1 [shape = 'u32[144,128]{1,0:T(1,128)}', space=vmem, size = 0x12000, scoped, tag = 'internal scratch']
  #allocation2 [shape = 'f32[8,1]{1,0:T(8,128)}', space=vmem, size = 0x1000, scoped, tag = 'scratch operand']
  #allocation3 [shape = 'f32[8,1]{1,0:T(8,128)}', space=vmem, size = 0x1000, scoped, tag = 'scratch operand']
  #allocation4 [shape = 'f32[8,1]{1,0:T(8,128)}', space=vmem, size = 0x1000, scoped, tag = 'scratch operand']
  %s0 = inlined_call_operand.hbm [shape: bf16[16,128], index: 0, kind: input, shape index: {}]
  %s1 = inlined_call_operand.hbm [shape: bf16[16,128], index: 1, kind: input, shape index: {}]
  %s2 = inlined_call_operand.hbm [shape: f32[16,128], index: 2, kind: output, shape index: {}]
  %s3 = sld [smem:[#allocation0]]
  $region65: #{tpu_custom_call.1} parent=0
    _
  %s5 = ssub.s32 1, %s3
  %s6 = scalar_select 0, %s5, %s3
  $region1: #{tpu_custom_call.1} parent=0
    #allocation5 [shape = 'u8[4096]{0}', space=vmem, size = 0x1000, scoped, tag = 'input window, operand 0']
    #allocation6 [shape = 's32[2]{0}', space=sflag, size = 0x8, scoped, tag = 'scoped memory for tpu_custom_call.1']
    #allocation7 [shape = 's32[2]{0}', space=sflag, size = 0x8, scoped, tag = 'scoped memory for tpu_custom_call.1']
    #allocation8 [shape = 'u8[4096]{0}', space=vmem, size = 0x1000, scoped, tag = 'input window, operand 1, single buffered']
    #allocation9 [shape = 's32[1]{0}', space=sflag, size = 0x4, scoped, tag = 'scoped memory for tpu_custom_call.1']
    #allocation10 [shape = 'u8[8192]{0}', space=vmem, size = 0x2000, scoped, tag = 'output window, operand 0']
    %7 = vsyncpa [#allocation6], 0
    %s8 = scalar_lea.sflag [#allocation6], 1
    %9 = vsyncpa %s8, 0
    %10 = vsyncpa [#allocation9], 0
    %11 = vsyncpa [#allocation7], 0
    %s12 = scalar_lea.sflag [#allocation7], 1
    %13 = vsyncpa %s12, 0
    loop: start=0, step=1, limit=6
    $region2: #{tpu_custom_call.1} parent=1 // loop_pre_header
      _
    $region3: #{tpu_custom_call.1} parent=1 // loop_header
      %s15 = sphi 0, %s19
      %p16 = scmp.ge.s32.totalorder %s15, 6
      %s22 = sphi 0, %s34
      %s23 = sphi 0, %s30
      %s24 = sphi 0, %s22
      %s25 = sphi 0, %s23
      %s26 = sphi 0, %s24
      %s27 = sphi 0, %s25
      %s37 = sphi 0, %s39
      %s40 = sphi 0, %s37
      %s41 = sphi 0, %s40
      %s57 = sphi 0, %s41
      %s61 = sphi 0, %s61
      %s63 = sphi 0, %s61
      %s64 = sphi 0, %s63
      %s78 = sphi 0, %s64
      %s84 = sphi 0, %s86
      %s87 = sphi 0, %s84
      %s88 = sphi 0, %s87
      %s104 = sphi 0, %s88
    $region4: #{tpu_custom_call.1} parent=1 // loop_header_branch
      %18 = sbr.rel (%p16) target = $region8
    $region5: #{tpu_custom_call.1} parent=1 // loop_body
      %s20 = ssub.s32 %s15, 1
      %s21 = ssub.s32 %s15, 2
      %s28 = sadd.s32 1, %s23
      %p29 = scmp.ge.s32.totalorder %s28, 2
      %s30 = scalar_select %p29, 0, %s28
      %s31 = sadd.s32 1, %s22
      %s32 = scalar_select %p29, %s31, %s22
      %p33 = scmp.ge.s32.totalorder %s32, 2
      %s34 = scalar_select %p33, 0, %s32
      %s35 = ssub.s32 %s22, %s34
      %p36 = scmp.eq.s32.totalorder %s35, 0
      %s38 = sadd.s32 %s37, 1
      %s39 = scalar_select %p36, %s37, %s38
      %p42 = pneg %p36
      %p43 = scmp.eq.s32.totalorder %s15, 3
      %p44 = por %p42, %p43
      %p45 = scmp.ne.s32.totalorder %s37, %s40
      %p46 = scmp.eq.s32.totalorder %s15, 0
      %p47 = por %p45, %p46
      %p48 = scmp.ne.s32.totalorder %s37, %s40
      %p49 = scmp.eq.s32.totalorder %s20, 3
      %p50 = por %p48, %p49
      %p51 = scmp.ne.s32.totalorder %s40, %s41
      %p52 = scmp.eq.s32.totalorder %s20, 0
      %p53 = por %p51, %p52
      %p54 = scmp.ne.s32.totalorder %s40, %s41
      %p55 = scmp.eq.s32.totalorder %s21, 3
      %p56 = por %p54, %p55
      %p58 = scmp.ne.s32.totalorder %s41, %s57
      %p59 = scmp.eq.s32.totalorder %s21, 0
      %p60 = por %p58, %p59
      %s62 = sadd.s32 %s61, 1
      %p65 = scmp.eq.s32.totalorder %s15, 3
      %p66 = scmp.ne.s32.totalorder %s61, %s63
      %p67 = scmp.eq.s32.totalorder %s15, 0
      %p68 = por %p66, %p67
      %p69 = scmp.ne.s32.totalorder %s61, %s63
      %p70 = scmp.eq.s32.totalorder %s20, 3
      %p71 = por %p69, %p70
      %p72 = scmp.ne.s32.totalorder %s63, %s64
      %p73 = scmp.eq.s32.totalorder %s20, 0
      %p74 = por %p72, %p73
      %p75 = scmp.ne.s32.totalorder %s63, %s64
      %p76 = scmp.eq.s32.totalorder %s21, 3
      %p77 = por %p75, %p76
      %p79 = scmp.ne.s32.totalorder %s64, %s78
      %p80 = scmp.eq.s32.totalorder %s21, 0
      %p81 = por %p79, %p80
      %s82 = ssub.s32 %s22, %s34
      %p83 = scmp.eq.s32.totalorder %s82, 0
      %s85 = sadd.s32 %s84, 1
      %s86 = scalar_select %p83, %s84, %s85
      %p89 = pneg %p83
      %p90 = scmp.eq.s32.totalorder %s15, 3
      %p91 = por %p89, %p90
      %p92 = scmp.ne.s32.totalorder %s84, %s87
      %p93 = scmp.eq.s32.totalorder %s15, 0
      %p94 = por %p92, %p93
      %p95 = scmp.ne.s32.totalorder %s84, %s87
      %p96 = scmp.eq.s32.totalorder %s20, 3
      %p97 = por %p95, %p96
      %p98 = scmp.ne.s32.totalorder %s87, %s88
      %p99 = scmp.eq.s32.totalorder %s20, 0
      %p100 = por %p98, %p99
      %p101 = scmp.ne.s32.totalorder %s87, %s88
      %p102 = scmp.eq.s32.totalorder %s21, 3
      %p103 = por %p101, %p102
      %p105 = scmp.ne.s32.totalorder %s88, %s104
      %p106 = scmp.eq.s32.totalorder %s21, 0
      %p107 = por %p105, %p106
      %p108 = scmp.le.s32.totalorder 1, %s15
      %p109 = scmp.lt.s32.totalorder %s15, 5
      %p110 = pnand %p108, %p109
      %p111 = pneg %p110
      // Predicated region
      $region9: #{tpu_custom_call.1} parent=5 // pred_check
        _
      $region10: #{tpu_custom_call.1} parent=5 // pred_check_branch
        %113 = sbr.rel (%p110) target = $region12
      $region11: #{tpu_custom_call.1} parent=5 // pred_region
        %s114 = ssub.s32 %s15, 1
        // Predicated region
        $region13: #{tpu_custom_call.1} parent=11 // pred_check
          %p115 = pneg %p74
        $region14: #{tpu_custom_call.1} parent=11 // pred_check_branch
          %117 = sbr.rel (%p115) target = $region16
        $region15: #{tpu_custom_call.1} parent=11 // pred_region
          %s119 = ssub.s32 128, 128
          %120 = vsyncadd [#allocation9], %s119
          %s121 = sshll.u32 [#allocation8], 4
          %s122 = int_to_ptr.vmem [resolvable:$true] %s121
          %127 = dma.hbm_to_vmem [thread:$0]  %s1, 128, %s122, [#allocation9], 64, 64, 4
        $region16: #{tpu_custom_call.1} parent=11 // pred_fallthru
          _
      $region12: #{tpu_custom_call.1} parent=5 // pred_fallthru
        _
      %p128 = scmp.lt.s32.totalorder %s15, 4
      // Predicated region
      $region17: #{tpu_custom_call.1} parent=5 // pred_check
        %p129 = pneg %p128
      $region18: #{tpu_custom_call.1} parent=5 // pred_check_branch
        %131 = sbr.rel (%p129) target = $region20
      $region19: #{tpu_custom_call.1} parent=5 // pred_region
        // Predicated region
        $region21: #{tpu_custom_call.1} parent=19 // pred_check
          %p132 = pneg %p47
        $region22: #{tpu_custom_call.1} parent=19 // pred_check_branch
          %134 = sbr.rel (%p132) target = $region24
        $region23: #{tpu_custom_call.1} parent=19 // pred_region
          %s135 = sand.u32 %s37, 1
          %s136 = scalar_lea.sflag [#allocation6], %s135
          %s137 = sand.u32 %s37, 1
          %s138 = smul.addr %s137, 4
          %s139 = scalar_lea.vmem [#allocation5], %s138
          %s141 = ssub.s32 64, 64
          %142 = vsyncadd %s136, %s141
          %s143 = smul.addr %s22, 64
          %s144 = scalar_lea.hbm %s0, %s143
          %s146 = sshll.u32 %s139, 4
          %s147 = int_to_ptr.vmem [resolvable:$true] %s146
          %149 = dma.hbm_to_vmem [thread:$0]  %s144, 64, %s147, %s136
        $region24: #{tpu_custom_call.1} parent=19 // pred_fallthru
          _
      $region20: #{tpu_custom_call.1} parent=5 // pred_fallthru
        _
      %p150 = scmp.le.s32.totalorder 1, %s15
      %p151 = scmp.lt.s32.totalorder %s15, 5
      %p152 = pnand %p150, %p151
      %p153 = pneg %p152
      // Predicated region
      $region25: #{tpu_custom_call.1} parent=5 // pred_check
        _
      $region26: #{tpu_custom_call.1} parent=5 // pred_check_branch
        %155 = sbr.rel (%p152) target = $region28
      $region27: #{tpu_custom_call.1} parent=5 // pred_region
        %s156 = ssub.s32 %s15, 1
        %s157 = sand.u32 %s40, 1
        %s158 = scalar_lea.sflag [#allocation6], %s157
        %s159 = sand.u32 %s40, 1
        %s160 = smul.addr %s159, 4
        %s161 = scalar_lea.vmem [#allocation5], %s160
        // Predicated region
        $region29: #{tpu_custom_call.1} parent=27 // pred_check
          %p162 = pneg %p53
        $region30: #{tpu_custom_call.1} parent=27 // pred_check_branch
          %164 = sbr.rel (%p162) target = $region32
        $region31: #{tpu_custom_call.1} parent=27 // pred_region
          %165 = dma.done %s158, 64
        $region32: #{tpu_custom_call.1} parent=27 // pred_fallthru
          _
        // Predicated region
        $region33: #{tpu_custom_call.1} parent=27 // pred_check
          %p166 = pneg %p74
        $region34: #{tpu_custom_call.1} parent=27 // pred_check_branch
          %168 = sbr.rel (%p166) target = $region36
        $region35: #{tpu_custom_call.1} parent=27 // pred_region
          %169 = dma.done [#allocation9], 128
        $region36: #{tpu_custom_call.1} parent=27 // pred_fallthru
          _
        %s170 = sand.u32 %s40, 1
        %s171 = scalar_lea.sflag [#allocation6], %s170
        %s172 = sand.u32 %s40, 1
        %s173 = smul.addr %s172, 4
        %s174 = scalar_lea.vmem [#allocation5], %s173
        %p175 = pneg %p53
        %p176 = pneg %p50
        %p177 = pneg %p74
        %p178 = pneg %p71
        %p179 = pneg %p100
        %p180 = pneg %p97
        %s181 = sand.u32 %s87, 1
        %s182 = scalar_lea.sflag [#allocation7], %s181
        %s183 = sand.u32 %s87, 1
        %s184 = smul.addr %s183, 8
        %s185 = scalar_lea.vmem [#allocation10], %s184
        %p187 = scmp.eq.s32.totalorder %s25, 0
        // Predicated region
        $region37: #{tpu_custom_call.1} parent=27 // pred_check
          %p188 = pneg %p187
        $region38: #{tpu_custom_call.1} parent=27 // pred_check_branch
          %190 = sbr.rel (%p188) target = $region40
        $region39: #{tpu_custom_call.1} parent=27 // pred_region
          %vm191 = vcmask 7168
          %192 = vst.msk [vmem:[#allocation2] sm:$0xff] %vm191, -1e+30
          %193 = vst.msk [vmem:[#allocation3] sm:$0xff] %vm191, 0.0
          %194 = vst.msk [vmem:[#allocation4] sm:$0xff] %vm191, 0.0
        $region40: #{tpu_custom_call.1} parent=27 // pred_fallthru
          _
        %s195 = smul.u32 %s25, 8
        %s196 = sshra.s32 %s195, 3
        %s197 = sand.u32 %s195, 7
        %s198 = smul.addr %s196, 4
        %s199 = scalar_lea.vmem [#allocation8], %s198
        %v200 = vld [vmem:[%s199] sm:$0xf]
        %v201 = vld [vmem:[%s161] sm:$0xf]
        %202 = vmatprep.subr.bf16.mxu0 0
        %203 = vmatpush1.bf16.xpose.msra.mxu0 %v200
        %204 = vmatprep.subr.bf16.mxu0 0
        %205 = vmatpush1.bf16.xpose.msra.mxu0 0
        %206 = vmatprep.subr.bf16.mxu0 0
        %207 = vmatpush1.bf16.xpose.msra.mxu0 0
        %208 = vmatprep.subr.bf16.mxu0 0
        %209 = vmatpush1.bf16.xpose.msra.mxu0 0
        %210 = vmatprep.subr.bf16.mxu0 0
        %211 = vmatpush1.bf16.xpose.msra.mxu0 0
        %212 = vmatprep.subr.bf16.mxu0 0
        %213 = vmatpush1.bf16.xpose.msra.mxu0 0
        %214 = vmatprep.subr.bf16.mxu0 0
        %215 = vmatpush1.bf16.xpose.msra.mxu0 0
        %216 = vmatprep.subr.bf16.mxu0 0
        %217 = vmatpush1.bf16.xpose.msra.mxu0 0
        %218 = vmatprep.subr.bf16.mxu0 0
        %219 = vmatpush1.bf16.xpose.msra.mxu0 0
        %220 = vmatprep.subr.bf16.mxu0 0
        %221 = vmatpush1.bf16.xpose.msra.mxu0 0
        %222 = vmatprep.subr.bf16.mxu0 0
        %223 = vmatpush1.bf16.xpose.msra.mxu0 0
        %224 = vmatprep.subr.bf16.mxu0 0
        %225 = vmatpush1.bf16.xpose.msra.mxu0 0
        %226 = vmatprep.subr.bf16.mxu0 0
        %227 = vmatpush1.bf16.xpose.msra.mxu0 0
        %228 = vmatprep.subr.bf16.mxu0 0
        %229 = vmatpush1.bf16.xpose.msra.mxu0 0
        %230 = vmatprep.subr.bf16.mxu0 0
        %231 = vmatpush1.bf16.xpose.msra.mxu0 0
        %232 = vmatprep.subr.bf16.mxu0 0
        %233 = vmatpush1.bf16.xpose.msra.mxu0 0
        %234 = vmatprep.mubr.bf16.mxu0 0
        %235 = vmatmul.mubr.bf16.gmra.mrb[0].mxu0 %v201
        %v236 = vpop.f32.mrb[0].mxu0
        %v237 = vadd.f32 0.0, %v236
        %v238 = vpop.f32.mrb[0].mxu0
        %v239 = vpop.f32.mrb[0].mxu0
        %v240 = vpop.f32.mrb[0].mxu0
        %241 = vdwg.mxu0
        %p242 = scmp.eq.s32.totalorder %s25, %s24
        // Predicated region
        $region41: #{tpu_custom_call.1} parent=27 // pred_check
          %p243 = pneg %p242
        $region42: #{tpu_custom_call.1} parent=27 // pred_check_branch
          %245 = sbr.rel (%p243) target = $region44
        $region43: #{tpu_custom_call.1} parent=27 // pred_region
          %v246 = vlaneseq
          %v247 = vshrl.u32 %v246, 7
          %v248 = vlaneseq
          %v249 = vand.u32 %v248, 127
          %vm250 = vcmp.eq.s32.totalorder %v247, %v249
          %v251 = vsel %vm250, %v237, 0.0
          %vm252 = vcmask 64512
          %v253 = vsel %vm252, %v251, 0.0
          %254 = vadd.xlane.f32.xlu0 %v253
          %v255 = vpop.xlane.xlu0 %254
          %vm256 = vcmask 7168
          %257 = vst.msk [vmem:[#allocation4] sm:$0xff] %vm256, %v255
        $region44: #{tpu_custom_call.1} parent=27 // pred_fallthru
          _
        %p258 = scmp.lt.s32.totalorder %s25, 1
        // Predicated region
        $region45: #{tpu_custom_call.1} parent=27 // pred_check
          %p259 = pneg %p258
        $region46: #{tpu_custom_call.1} parent=27 // pred_check_branch
          %261 = sbr.rel (%p259) target = $region48
        $region47: #{tpu_custom_call.1} parent=27 // pred_region
          %v262 = vld [vmem:[#allocation2] sm:$0xff]
          %vm263 = vcmask 64512
          %v264 = vsel %vm263, %v237, -inf
          %265 = vmax.xlane.f32.xlu0 %v264
          %v266 = vpop.xlane.xlu0 %265
          %v267 = vmax.f32 %v262, %v266
          %v268 = vsub.f32 %v262, %v267
          %v269 = vmul.f32 %v268, 1.442695
          %v270 = vpow.pop %v269
          %v271 = vld [vmem:[#allocation3] sm:$0xff]
          %v272 = vmul.f32 %v270, %v271
          %274 = vset.pattern.permute.xlu0 0
          %275 = vperm.xlu0 %274, %v267
          %v276 = vpop.permute.xlu0 %275
          %v278 = vsub.f32 %v237, %v276
          %v279 = vmul.f32 %v278, 1.442695
          %v280 = vpow.pop %v279
          %v281 = vsel %vm263, %v280, 0.0
          %282 = vadd.xlane.f32.xlu0 %v281
          %v283 = vpop.xlane.xlu0 %282
          %v284 = vadd.f32 %v272, %v283
          %vm285 = vcmask 7168
          %286 = vst.msk [vmem:[#allocation3] sm:$0xff] %vm285, %v284
          %287 = vst.msk [vmem:[#allocation2] sm:$0xff] %vm285, %v267
        $region48: #{tpu_custom_call.1} parent=27 // pred_fallthru
          _
        %p288 = scmp.eq.s32.totalorder %s25, 1
        // Predicated region
        $region49: #{tpu_custom_call.1} parent=27 // pred_check
          %p289 = pneg %p288
        $region50: #{tpu_custom_call.1} parent=27 // pred_check_branch
          %291 = sbr.rel (%p289) target = $region52
        $region51: #{tpu_custom_call.1} parent=27 // pred_region
          %v292 = vlaneseq
          %v293 = vand.u32 %v292, 127
          %v294 = vstv %s195
          %v295 = vadd.s32 %v294, %v293
          %vm296 = vcmp.lt.s32.totalorder %v295, 12
          %v297 = vsel %vm296, %v237, -1e+30
          %v298 = vld [vmem:[#allocation2] sm:$0xff]
          %vm299 = vcmask 64512
          %v300 = vsel %vm299, %v297, -inf
          %301 = vmax.xlane.f32.xlu0 %v300
          %v302 = vpop.xlane.xlu0 %301
          %v303 = vmax.f32 %v298, %v302
          %v304 = vsub.f32 %v298, %v303
          %v305 = vmul.f32 %v304, 1.442695
          %v306 = vpow.pop %v305
          %v307 = vld [vmem:[#allocation3] sm:$0xff]
          %v308 = vmul.f32 %v306, %v307
          %310 = vset.pattern.permute.xlu0 0
          %311 = vperm.xlu0 %310, %v303
          %v312 = vpop.permute.xlu0 %311
          %v314 = vsub.f32 %v297, %v312
          %v315 = vmul.f32 %v314, 1.442695
          %v316 = vpow.pop %v315
          %v317 = vsel %vm299, %v316, 0.0
          %318 = vadd.xlane.f32.xlu0 %v317
          %v319 = vpop.xlane.xlu0 %318
          %v320 = vadd.f32 %v308, %v319
          %vm321 = vcmask 7168
          %322 = vst.msk [vmem:[#allocation3] sm:$0xff] %vm321, %v320
          %323 = vst.msk [vmem:[#allocation2] sm:$0xff] %vm321, %v303
          %v324 = vld [vmem:[#allocation2] sm:$0xff]
          %v325 = vld [vmem:[#allocation3] sm:$0xff]
          %v326 = vlog2.pop %v325
          %v327 = vmul.f32 %v326, 0.6931472
          %v328 = vadd.f32 %v324, %v327
          %v329 = vld [vmem:[#allocation4] sm:$0xff]
          %v330 = vsub.f32 %v328, %v329
          %332 = vset.pattern.permute.xlu0 0
          %333 = vperm.xlu0 %332, %v330
          %v334 = vpop.permute.xlu0 %333
          %336 = vst [vmem:[%s185] sm:$0xff] %v334
        $region52: #{tpu_custom_call.1} parent=27 // pred_fallthru
          _
        %s337 = sand.u32 %s87, 1
        %s338 = scalar_lea.sflag [#allocation7], %s337
        %s339 = sand.u32 %s87, 1
        %s340 = smul.addr %s339, 8
        %s341 = scalar_lea.vmem [#allocation10], %s340
        // Predicated region
        $region53: #{tpu_custom_call.1} parent=27 // pred_check
          %p342 = pneg %p97
        $region54: #{tpu_custom_call.1} parent=27 // pred_check_branch
          %344 = sbr.rel (%p342) target = $region56
        $region55: #{tpu_custom_call.1} parent=27 // pred_region
          %s346 = ssub.s32 128, 128
          %347 = vsyncadd %s338, %s346
          %s348 = smul.addr %s24, 128
          %s349 = scalar_lea.hbm %s2, %s348
          %s351 = sshll.u32 %s341, 4
          %s352 = int_to_ptr.vmem [resolvable:$true] %s351
          %354 = dma.vmem_to_hbm [thread:$0]  %s352, 128, %s349, %s338
        $region56: #{tpu_custom_call.1} parent=27 // pred_fallthru
          _
      $region28: #{tpu_custom_call.1} parent=5 // pred_fallthru
        _
      %p355 = scmp.le.s32.totalorder 2, %s15
      // Predicated region
      $region57: #{tpu_custom_call.1} parent=5 // pred_check
        %p356 = pneg %p355
      $region58: #{tpu_custom_call.1} parent=5 // pred_check_branch
        %358 = sbr.rel (%p356) target = $region60
      $region59: #{tpu_custom_call.1} parent=5 // pred_region
        %s359 = ssub.s32 %s15, 2
        // Predicated region
        $region61: #{tpu_custom_call.1} parent=59 // pred_check
          %p360 = pneg %p103
        $region62: #{tpu_custom_call.1} parent=59 // pred_check_branch
          %362 = sbr.rel (%p360) target = $region64
        $region63: #{tpu_custom_call.1} parent=59 // pred_region
          %s363 = sand.u32 %s88, 1
          %s364 = scalar_lea.sflag [#allocation7], %s363
          %s365 = sand.u32 %s88, 1
          %s366 = smul.addr %s365, 8
          %s367 = scalar_lea.vmem [#allocation10], %s366
          %368 = dma.done %s364, 128
        $region64: #{tpu_custom_call.1} parent=59 // pred_fallthru
          _
      $region60: #{tpu_custom_call.1} parent=5 // pred_fallthru
        _
    $region6: #{tpu_custom_call.1} parent=1 // loop_footer
      %s19 = sadd.s32 1, %s15
    $region7: #{tpu_custom_call.1} parent=1 // loop_footer_branch
      %14 = sbr.rel target = $region3
    $region8: #{tpu_custom_call.1} parent=1 // loop_exit
      _
    %369 = vsyncpa [#allocation6], 1
    %s370 = scalar_lea.sflag [#allocation6], 1
    %371 = vsyncpa %s370, 1
    %372 = vsyncpa [#allocation9], 1
    %373 = vsyncpa [#allocation7], 1
    %s374 = scalar_lea.sflag [#allocation7], 1
    %375 = vsyncpa %s374, 1

</llo_original>
